<compile_context>
chip_gen: v7x
topology: tpu7x:2x2x1
jax: 0.10.0
libtpu: 0.0.40
codegen_flags: <defaults>
</compile_context>

<pallas_src>
import functools

import jax
import jax.numpy as jnp
import numpy as np
from jax.experimental import pallas as pl
from jax.experimental.pallas import tpu as pltpu


def _round_up(v: int, m: int) -> int:
    return ((v + m - 1) // m) * m


def _pos_enc_idr_kernel(x_ref, fp_ref, o_ref, *, in_features, channels,
                        num_bands, out_dim, out_dtype):
    """One lane tile.

    x_ref  : (F, tile)        coords, points on the lane (128-wide) axis
    fp_ref : (R, 2)           col 0 = per-row frequency, col 1 = phase (0 | pi/2)
    o_ref  : (tile, out_dim)  [coords | sin/cos bands] in the module's layout
    """
    coords_t = x_ref[...]                                  # (F, tile) f32
    tile = coords_t.shape[1]
    fpv = fp_ref[...]                                      # (R, 2)
    freq = fpv[:, 0:1]                                     # (R, 1)
    phase = fpv[:, 1:2]                                    # (R, 1)

    # Channel selection via static sublane slices (no zero multiplies).
    if tuple(channels) == tuple(range(in_features)):
        sel_c = coords_t                                   # (C, tile)
    else:
        sel_c = jnp.concatenate(
            [coords_t[c:c + 1, :] for c in channels], axis=0)

    # Repeat selected rows once per (sin, cos) x band; a single dense sin with a
    # per-row phase (cos(x) = sin(x + pi/2)) produces every band at once.
    sel = jnp.concatenate([sel_c] * (2 * num_bands), axis=0)   # (R, tile)
    enc = jnp.sin(freq * sel + phase)                          # (R, tile)

    # [coords ; bands], padded to an 8-row multiple so the on-chip transpose is
    # fully (8,128)-aligned, then flipped to (points, features) for the store.
    full = jnp.concatenate([coords_t, enc], axis=0)            # (out_dim, tile)
    pad_rows = (-out_dim) % 8
    if pad_rows:
        full = jnp.concatenate(
            [full, jnp.zeros((pad_rows, tile), full.dtype)], axis=0)
    out_t = full.T                                             # (tile, out_dim+pad)
    o_ref[...] = out_t[:, :out_dim].astype(out_dtype)
    # TODO(synk): if bundle dumps show the (R, tile) chain materializing/spilling
    # at very large tiles, restructure as an unrolled loop over 8-row groups of R.


def make_pos_encoding_idr(in_features: int, num_bands: int, channels=None,
                          bands_exp: bool = False, lane_tile: int = 4096,
                          out_dtype=jnp.float32):
    """Returns (apply_fn, out_dim) mirroring PosEncodingIDR.forward.

    lane_tile : points per grid step (multiple of 128).  4096-8192 is a good
      default; v7x benefits from 8192-16384 as long as the grid keeps >=2 steps.
    out_dtype : jnp.float32 (exact module semantics) or jnp.bfloat16 to halve
      the dominant HBM write stream (biggest relative win on v5e).
    """
    assert num_bands >= 1
    if channels is None:
        channels = tuple(range(in_features))
    else:
        channels = tuple(int(c) for c in np.array(channels, int))
    assert len(channels) >= 1
    C = len(channels)
    R = 2 * C * num_bands
    out_dim = in_features + R

    # Static per-row (frequency, phase) table.  Row ordering matches the torch
    # cat: [coords | sin(b0) C cols | cos(b0) C cols | sin(b1) | cos(b1) | ...].
    fp_np = np.zeros((R, 2), dtype=np.float32)
    for g in range(2 * num_bands):            # g = 2*i (sin rows) or 2*i+1 (cos rows)
        i = g // 2
        f = (2.0 ** i) * np.pi if bands_exp else 2.0 * (i + 1) * np.pi
        fp_np[g * C:(g + 1) * C, 0] = f
        fp_np[g * C:(g + 1) * C, 1] = (np.pi / 2.0) if (g % 2 == 1) else 0.0
    fp = jnp.asarray(fp_np)

    lane_tile = max(128, (int(lane_tile) // 128) * 128)

    kernel = functools.partial(
        _pos_enc_idr_kernel, in_features=in_features, channels=channels,
        num_bands=num_bands, out_dim=out_dim, out_dtype=out_dtype)

    @jax.jit
    def apply(coords):
        orig_shape = coords.shape
        assert orig_shape[-1] == in_features
        x = coords.reshape(-1, in_features)
        if x.dtype != jnp.float32:
            x = x.astype(jnp.float32)
        n = x.shape[0]

        # Big lane tiles amortize the ~0.35us per-grid-step overhead, clamped so
        # the grid keeps >=2 steps when possible (v7x has 2 TensorCores).
        # No jnp.pad: grid uses cdiv and Pallas clips the trailing block.
        tile = max(128, min(lane_tile, _round_up((n + 1) // 2, 128)))
        grid = (pl.cdiv(n, tile),)

        # Minor-stream transpose (16 B/point) keeps kernel loads + sin lane-dense;
        # the dominant output stream is written untransposed by the kernel.
        xt = x.T                                                # (F, n)

        out = pl.pallas_call(
            kernel,
            out_shape=jax.ShapeDtypeStruct((n, out_dim), out_dtype),
            grid_spec=pltpu.PrefetchScalarGridSpec(
                num_scalar_prefetch=0,
                grid=grid,
                in_specs=[
                    pl.BlockSpec((in_features, tile), lambda i: (0, i)),
                    pl.BlockSpec((R, 2), lambda i: (0, 0)),
                ],
                out_specs=pl.BlockSpec((tile, out_dim), lambda i: (i, 0)),
            ),
            compiler_params=pltpu.CompilerParams(
                dimension_semantics=("parallel",),
                vmem_limit_bytes=32 * 1024 * 1024),
        )(xt, fp)
        return out.reshape(*orig_shape[:-1], out_dim)

    return apply, out_dim


def _reference(coords, num_bands, channels, bands_exp):
    """Pure-JAX reference mirroring the PyTorch forward exactly."""
    sel = jnp.stack([coords[..., int(i)] for i in channels], axis=-1)
    res = [coords]
    for i in range(num_bands):
        freq = (2.0 ** i) * np.pi if bands_exp else 2.0 * (i + 1) * np.pi
        arg = jnp.float32(freq) * sel
        res.append(jnp.sin(arg))
        res.append(jnp.cos(arg))
    return jnp.concatenate(res, axis=-1)


if __name__ == "__main__":
    key = jax.random.PRNGKey(0)
    k1, k2, k3 = jax.random.split(key, 3)

    # Case 1: default channels (all), linear bands.
    in_features, num_bands = 4, 8
    apply_fn, out_dim = make_pos_encoding_idr(in_features, num_bands)
    coords = jax.random.uniform(k1, (2, 8, in_features), jnp.float32, -1.0, 1.0)
    out = jax.block_until_ready(apply_fn(coords))
    assert out.shape == (2, 8, out_dim), out.shape
    ref = _reference(coords, num_bands, np.arange(in_features), False)
    np.testing.assert_allclose(np.asarray(out), np.asarray(ref),
                               rtol=1e-4, atol=1e-4)

    # Case 2: channel subset + exponential bands.
    channels = [0, 2]
    apply_fn2, out_dim2 = make_pos_encoding_idr(in_features, num_bands=6,
                                                channels=channels, bands_exp=True)
    coords2 = jax.random.uniform(k2, (3, 5, in_features), jnp.float32, -1.0, 1.0)
    out2 = jax.block_until_ready(apply_fn2(coords2))
    assert out2.shape == (3, 5, out_dim2), out2.shape
    ref2 = _reference(coords2, 6, np.array(channels), True)
    np.testing.assert_allclose(np.asarray(out2), np.asarray(ref2),
                               rtol=1e-4, atol=1e-4)

    # Case 3: multi-block grid with a partial (clipped) trailing block.
    coords3 = jax.random.uniform(k3, (2, 17, 16, in_features), jnp.float32, -1.0, 1.0)
    out3 = jax.block_until_ready(apply_fn(coords3))
    assert out3.shape == (2, 17, 16, out_dim), out3.shape
    ref3 = _reference(coords3, num_bands, np.arange(in_features), False)
    np.testing.assert_allclose(np.asarray(out3), np.asarray(ref3),
                               rtol=1e-4, atol=1e-4)

    # Case 4: bf16 output path (halves the dominant HBM write stream).
    apply_bf16, out_dim_bf16 = make_pos_encoding_idr(in_features, num_bands,
                                                     out_dtype=jnp.bfloat16)
    out4 = jax.block_until_ready(apply_bf16(coords))
    assert out4.shape == (2, 8, out_dim_bf16) and out4.dtype == jnp.bfloat16
    np.testing.assert_allclose(np.asarray(out4, dtype=np.float32),
                               np.asarray(ref), rtol=2e-2, atol=2e-2)

    print("KERNEL_OK")
</pallas_src>

<mosaic_0001>
module attributes {stable_mosaic.version = 11 : i64} {
  func.func @_pos_enc_idr_kernel(%arg0: i32, %arg1: memref<4x128xf32, #tpu.memory_space<vmem>>, %arg2: memref<64x2xf32, #tpu.memory_space<vmem>>, %arg3: memref<128x68xf32, #tpu.memory_space<vmem>>) attributes {dimension_semantics = [#tpu.dimension_semantics<parallel>], iteration_bounds = array<i64: 1>, scalar_prefetch = 0 : i64, scratch_operands = 0 : i64, tpu.core_type = #tpu.core_type<tc>, window_params = [{transform_indices = @transform_0, window_bounds = array<i64: 4, 128>}, {pipeline_mode = #tpu.pipeline_mode<synchronous>, transform_indices = @transform_1, window_bounds = array<i64: 64, 2>}, {transform_indices = @transform_2, window_bounds = array<i64: 128, 68>}]} {
    %c0 = arith.constant 0 : index
    %c0_0 = arith.constant 0 : index
    %0 = vector.load %arg1[%c0, %c0_0] : memref<4x128xf32, #tpu.memory_space<vmem>>, vector<4x128xf32>
    %c0_1 = arith.constant 0 : index
    %c0_2 = arith.constant 0 : index
    %1 = vector.load %arg2[%c0_1, %c0_2] : memref<64x2xf32, #tpu.memory_space<vmem>>, vector<64x2xf32>
    %2 = vector.extract_strided_slice %1 {offsets = [0, 0], sizes = [64, 1], strides = [1, 1]} : vector<64x2xf32> to vector<64x1xf32>
    %3 = vector.extract_strided_slice %1 {offsets = [0, 1], sizes = [64, 1], strides = [1, 1]} : vector<64x2xf32> to vector<64x1xf32>
    %4 = tpu.concatenate %0, %0, %0, %0, %0, %0, %0, %0, %0, %0, %0, %0, %0, %0, %0, %0 in 0 : vector<4x128xf32>, vector<4x128xf32>, vector<4x128xf32>, vector<4x128xf32>, vector<4x128xf32>, vector<4x128xf32>, vector<4x128xf32>, vector<4x128xf32>, vector<4x128xf32>, vector<4x128xf32>, vector<4x128xf32>, vector<4x128xf32>, vector<4x128xf32>, vector<4x128xf32>, vector<4x128xf32>, vector<4x128xf32> -> vector<64x128xf32>
    %5 = vector.broadcast %2 : vector<64x1xf32> to vector<64x128xf32>
    %6 = arith.mulf %5, %4 : vector<64x128xf32>
    %7 = vector.broadcast %3 : vector<64x1xf32> to vector<64x128xf32>
    %8 = arith.addf %6, %7 : vector<64x128xf32>
    %9 = math.sin %8 : vector<64x128xf32>
    %10 = tpu.concatenate %0, %9 in 0 : vector<4x128xf32>, vector<64x128xf32> -> vector<68x128xf32>
    %cst = arith.constant 0.000000e+00 : f32
    %11 = vector.broadcast %cst : f32 to vector<4x128xf32>
    %12 = tpu.concatenate %10, %11 in 0 : vector<68x128xf32>, vector<4x128xf32> -> vector<72x128xf32>
    %13 = tpu.transpose %12, [1, 0] : vector<72x128xf32> -> vector<128x72xf32>
    %14 = vector.extract_strided_slice %13 {offsets = [0, 0], sizes = [128, 68], strides = [1, 1]} : vector<128x72xf32> to vector<128x68xf32>
    %c0_3 = arith.constant 0 : index
    %c0_4 = arith.constant 0 : index
    %15 = vector.load %arg3[%c0_3, %c0_4] : memref<128x68xf32, #tpu.memory_space<vmem>>, vector<128x68xf32>
    tpu.vector_store %arg3[%c0_3, %c0_4], %14 {strides = array<i32>} : memref<128x68xf32, #tpu.memory_space<vmem>>, vector<128x68xf32>,
    return
  }
  func.func @transform_0(%arg0: i32) -> (i32, i32) {
    %c0_i32 = arith.constant 0 : i32
    %c0_i32_0 = arith.constant 0 : i32
    return %c0_i32, %arg0 : i32, i32
  }
  func.func @transform_1(%arg0: i32) -> (i32, i32) {
    %c0_i32 = arith.constant 0 : i32
    %c0_i32_0 = arith.constant 0 : i32
    %c0_i32_1 = arith.constant 0 : i32
    return %c0_i32, %c0_i32_0 : i32, i32
  }
  func.func @transform_2(%arg0: i32) -> (i32, i32) {
    %c0_i32 = arith.constant 0 : i32
    %c0_i32_0 = arith.constant 0 : i32
    return %arg0, %c0_i32 : i32, i32
  }
}

</mosaic_0001>

<llo_original>
// kernel: apply.1
$region0: #{apply.1}
  #allocation0 [shape = 'u32[]', space=smem, size = 0x4, offset = 0x4, fixed_abs, tag = 'smem constant byte address 0x4 - core index']
  #allocation1 [shape = 'u32[144,128]{1,0:T(1,128)}', space=vmem, size = 0x12000, scoped, tag = 'internal scratch']
  %s0 = inlined_call_operand.vmem [shape: f32[4,16], index: 0, kind: input, shape index: {}]
  %s1 = inlined_call_operand.hbm [shape: f32[64,2], index: 1, kind: input, shape index: {}]
  %s2 = inlined_call_operand.hbm [shape: f32[16,68], index: 2, kind: output, shape index: {}]
  %s3 = sld [smem:[#allocation0]]
  $region22: #{apply.1} parent=0
    _
  %s5 = ssub.s32 1, %s3
  %s6 = scalar_select 0, %s5, %s3
  $region1: #{apply.1} parent=0
    #allocation2 [shape = 'u8[32768]{0}', space=vmem, size = 0x8000, scoped, tag = 'input window, operand 1, single buffered']
    #allocation3 [shape = 's32[1]{0}', space=sflag, size = 0x4, scoped, tag = 'scoped memory for apply.1']
    #allocation4 [shape = 's32[1]{0}', space=sflag, size = 0x4, scoped, tag = 'scoped memory for apply.1']
    #allocation5 [shape = 'u8[65536]{0}', space=vmem, size = 0x10000, scoped, tag = 'output window, operand 0, single buffered']
    %7 = vsyncpa [#allocation3], 0
    %8 = vsyncpa [#allocation4], 0
    // Predicated region
    $region2: #{apply.1} parent=1 // pred_check
      _
    $region3: #{apply.1} parent=1 // pred_check_branch
      %10 = sbr.rel (0) target = $region5
    $region4: #{apply.1} parent=1 // pred_region
      _
    $region5: #{apply.1} parent=1 // pred_fallthru
      _
    // Predicated region
    $region6: #{apply.1} parent=1 // pred_check
      _
    $region7: #{apply.1} parent=1 // pred_check_branch
      %12 = sbr.rel (0) target = $region9
    $region8: #{apply.1} parent=1 // pred_region
      %s14 = ssub.s32 1024, 1024
      %15 = vsyncadd [#allocation3], %s14
      %s16 = sshll.u32 [#allocation2], 4
      %s17 = int_to_ptr.vmem [resolvable:$true] %s16
      %22 = dma.hbm_to_vmem [thread:$0]  %s1, 1024, %s17, [#allocation3], 128, 128, 8
    $region9: #{apply.1} parent=1 // pred_fallthru
      _
    // Predicated region
    $region10: #{apply.1} parent=1 // pred_check
      _
    $region11: #{apply.1} parent=1 // pred_check_branch
      %24 = sbr.rel (0) target = $region13
    $region12: #{apply.1} parent=1 // pred_region
      %25 = dma.done [#allocation3], 1024
    $region13: #{apply.1} parent=1 // pred_fallthru
      _
    %v26 = vld [vmem:[%s0] sm:$0xf]
    %v27 = vld [vmem:[#allocation2] sm:$0xff]
    %v28 = vld [vmem:[#allocation2 + $0x8] sm:$0xff]
    %v29 = vld [vmem:[#allocation2 + $0x10] sm:$0xff]
    %v30 = vld [vmem:[#allocation2 + $0x18] sm:$0xff]
    %v31 = vld [vmem:[#allocation2 + $0x20] sm:$0xff]
    %v32 = vld [vmem:[#allocation2 + $0x28] sm:$0xff]
    %v33 = vld [vmem:[#allocation2 + $0x30] sm:$0xff]
    %v34 = vld [vmem:[#allocation2 + $0x38] sm:$0xff]
    %v36 = vrot.slane %v26, 4
    %vm38 = vcmask 1043456
    %v39 = vsel %vm38, %v26, %v36
    %41 = vset.pattern.permute.xlu0 0
    %42 = vperm.xlu0 %41, %v27
    %v43 = vpop.permute.xlu0 %42
    %46 = vset.pattern.permute.xlu0 0
    %47 = vperm.xlu0 %46, %v28
    %v48 = vpop.permute.xlu0 %47
    %51 = vset.pattern.permute.xlu0 0
    %52 = vperm.xlu0 %51, %v29
    %v53 = vpop.permute.xlu0 %52
    %56 = vset.pattern.permute.xlu0 0
    %57 = vperm.xlu0 %56, %v30
    %v58 = vpop.permute.xlu0 %57
    %61 = vset.pattern.permute.xlu0 0
    %62 = vperm.xlu0 %61, %v31
    %v63 = vpop.permute.xlu0 %62
    %66 = vset.pattern.permute.xlu0 0
    %67 = vperm.xlu0 %66, %v32
    %v68 = vpop.permute.xlu0 %67
    %71 = vset.pattern.permute.xlu0 0
    %72 = vperm.xlu0 %71, %v33
    %v73 = vpop.permute.xlu0 %72
    %76 = vset.pattern.permute.xlu0 0
    %77 = vperm.xlu0 %76, %v34
    %v78 = vpop.permute.xlu0 %77
    %v80 = vmul.f32 %v43, %v39
    %v81 = vmul.f32 %v48, %v39
    %v82 = vmul.f32 %v53, %v39
    %v83 = vmul.f32 %v58, %v39
    %v84 = vmul.f32 %v63, %v39
    %v85 = vmul.f32 %v68, %v39
    %v86 = vmul.f32 %v73, %v39
    %v87 = vmul.f32 %v78, %v39
    %88 = vset.pattern.permute.xlu0 1
    %89 = vperm.xlu0 %88, %v27
    %v90 = vpop.permute.xlu0 %89
    %92 = vset.pattern.permute.xlu0 1
    %93 = vperm.xlu0 %92, %v28
    %v94 = vpop.permute.xlu0 %93
    %96 = vset.pattern.permute.xlu0 1
    %97 = vperm.xlu0 %96, %v29
    %v98 = vpop.permute.xlu0 %97
    %100 = vset.pattern.permute.xlu0 1
    %101 = vperm.xlu0 %100, %v30
    %v102 = vpop.permute.xlu0 %101
    %104 = vset.pattern.permute.xlu0 1
    %105 = vperm.xlu0 %104, %v31
    %v106 = vpop.permute.xlu0 %105
    %108 = vset.pattern.permute.xlu0 1
    %109 = vperm.xlu0 %108, %v32
    %v110 = vpop.permute.xlu0 %109
    %112 = vset.pattern.permute.xlu0 1
    %113 = vperm.xlu0 %112, %v33
    %v114 = vpop.permute.xlu0 %113
    %116 = vset.pattern.permute.xlu0 1
    %117 = vperm.xlu0 %116, %v34
    %v118 = vpop.permute.xlu0 %117
    %v120 = vadd.f32 %v80, %v90
    %v121 = vadd.f32 %v81, %v94
    %v122 = vadd.f32 %v82, %v98
    %v123 = vadd.f32 %v83, %v102
    %v124 = vadd.f32 %v84, %v106
    %v125 = vadd.f32 %v85, %v110
    %v126 = vadd.f32 %v86, %v114
    %v127 = vadd.f32 %v87, %v118
    %v128 = vand.u32 2147483647, %v120
    %vm129 = vcmp.le.f32.partialorder %v128, 0.7853982
    %vm130 = vcmp.lt.s32.totalorder %v120, 0
    %v131 = vand.u32 %v120, 2139095040
    %v132 = vshrl.u32 %v131, 23
    %v133 = vsub.s32 %v132, 127
    %v134 = vand.u32 2147483647, %v120
    %v135 = vand.u32 %v134, 8388607
    %v136 = vor.u32 %v135, 8388608
    %v137 = vsub.s32 0, %v136
    %v138 = vadd.s32 %v133, 1
    %vm139 = vcmp.gt.s32.totalorder %v138, 0
    %v140 = vsel %vm139, %v138, 0
    %v141 = vshrl.u32 %v140, 5
    %v142 = vand.u32 %v140, 31
    %v143 = vsub.s32 32, %v142
    %v144 = vshrl.u32 683565275, %v143
    %v145 = vshll.u32 683565275, %v142
    %v146 = vshrl.u32 2475754826, %v143
    %v147 = vor.u32 %v145, %v146
    %v148 = vshll.u32 2475754826, %v142
    %v149 = vshrl.u32 2131351028, %v143
    %v150 = vor.u32 %v148, %v149
    %v151 = vshll.u32 2131351028, %v142
    %v152 = vshrl.u32 2102212464, %v143
    %v153 = vor.u32 %v151, %v152
    %v154 = vshll.u32 2102212464, %v142
    %v155 = vshrl.u32 920167782, %v143
    %v156 = vor.u32 %v154, %v155
    %v157 = vshll.u32 920167782, %v142
    %v158 = vshrl.u32 1326507024, %v143
    %v159 = vor.u32 %v157, %v158
    %vm160 = vcmp.lt.s32.totalorder %v141, 1
    %vm161 = vcmp.lt.s32.totalorder %v141, 2
    %vm162 = vcmp.lt.s32.totalorder %v141, 3
    %vm163 = vcmp.lt.s32.totalorder %v141, 4
    %v164 = vsel %vm160, %v144, %v147
    %v165 = vsel %vm163, %v153, 2102212464
    %v166 = vsel %vm162, %v150, %v165
    %v167 = vsel %vm161, %v164, %v166
    %v168 = vsel %vm160, %v147, %v150
    %v169 = vsel %vm163, %v156, 920167782
    %v170 = vsel %vm162, %v153, %v169
    %v171 = vsel %vm161, %v168, %v170
    %v172 = vsel %vm160, %v150, %v153
    %v173 = vsel %vm163, %v159, 1326507024
    %v174 = vsel %vm162, %v156, %v173
    %v175 = vsel %vm161, %v172, %v174
    %v176 = vshll.u32 %v136, 8
    %v177 = vmul.u32.u64.compose %v176, %v175
    %v178 = vextract.low.u32 %v177
    %v179 = vextract.high.u32 %v177
    %v180 = vmul.u32.u64.compose %v176, %v171
    %v181 = vextract.low.u32 %v180
    %v182 = vextract.high.u32 %v180
    %v183 = vmul.u32 %v176, %v167
    %v184 = vadd.s32 %v179, %v181
    %vm185 = vc.u32 %v179, %v181
    %v186 = vadd.s32 %v182, 1
    %v187 = vsel %vm185, %v186, %v182
    %v188 = vadd.s32 %v183, %v187
    %v189 = vadd.s32 %v188, 536870912
    %v190 = vshrl.u32 %v189, 30
    %v191 = vshll.u32 %v190, 30
    %v192 = vsub.s32 %v188, %v191
    %vm193 = vcmp.lt.s32.totalorder %v192, 0
    %v194 = vsub.s32 0, %v192
    %v195 = vsel %vm193, %v194, %v192
    %v196 = vclz %v195
    %v197 = vsub.s32 %v196, 2
    %vm198 = vcmp.gt.s32.totalorder 0, %v197
    %v199 = vsel %vm198, 0, %v197
    %v200 = vsub.s32 32, %v199
    %v201 = vshll.u32 %v192, %v199
    %v202 = vshrl.u32 %v184, %v200
    %v203 = vor.u32 %v201, %v202
    %v204 = vsub.s32 4294967266, %v199
    %v205 = vadd.s32 %v204, 127
    %v206 = vshll.u32 %v205, 23
    %v207 = vor.u32 4788187, %v206
    %v208 = vand.u32 2147483647, %v207
    %v210 = vcvt.s32.f32 %v203
    %v211 = vmul.f32 %v210, %v208
    %v212 = vxor.u32 %v211, 2147483648
    %v213 = vsel %vm130, %v212, %v211
    %v214 = vsub.s32 4, %v190
    %v215 = vsel %vm130, %v214, %v190
    %v216 = vsel %vm129, %v120, %v213
    %v217 = vsel %vm129, 0, %v215
    %v218 = vcosq.f32.pop %v216
    %v219 = vsinq.f32.pop %v216
    %vm220 = vweird.f32 %v120
    %v221 = vadd.s32 %v217, 3
    %v222 = vand.u32 %v221, 3
    %vm223 = vcmp.lt.s32.totalorder %v222, 2
    %vm224 = vcmp.eq.s32.totalorder %v222, 0
    %v225 = vxor.u32 %v219, 2147483648
    %v226 = vsel %vm224, %v218, %v225
    %vm227 = vcmp.eq.s32.totalorder %v222, 2
    %v228 = vxor.u32 %v218, 2147483648
    %v229 = vsel %vm227, %v228, %v219
    %v230 = vsel %vm223, %v226, %v229
    %v231 = vsel %vm220, nan, %v230
    %v232 = vand.u32 2147483647, %v121
    %vm233 = vcmp.le.f32.partialorder %v232, 0.7853982
    %vm234 = vcmp.lt.s32.totalorder %v121, 0
    %v235 = vand.u32 %v121, 2139095040
    %v236 = vshrl.u32 %v235, 23
    %v237 = vsub.s32 %v236, 127
    %v238 = vand.u32 2147483647, %v121
    %v239 = vand.u32 %v238, 8388607
    %v240 = vor.u32 %v239, 8388608
    %v241 = vsub.s32 0, %v240
    %v242 = vadd.s32 %v237, 1
    %vm243 = vcmp.gt.s32.totalorder %v242, 0
    %v244 = vsel %vm243, %v242, 0
    %v245 = vshrl.u32 %v244, 5
    %v246 = vand.u32 %v244, 31
    %v247 = vsub.s32 32, %v246
    %v248 = vshrl.u32 683565275, %v247
    %v249 = vshll.u32 683565275, %v246
    %v250 = vshrl.u32 2475754826, %v247
    %v251 = vor.u32 %v249, %v250
    %v252 = vshll.u32 2475754826, %v246
    %v253 = vshrl.u32 2131351028, %v247
    %v254 = vor.u32 %v252, %v253
    %v255 = vshll.u32 2131351028, %v246
    %v256 = vshrl.u32 2102212464, %v247
    %v257 = vor.u32 %v255, %v256
    %v258 = vshll.u32 2102212464, %v246
    %v259 = vshrl.u32 920167782, %v247
    %v260 = vor.u32 %v258, %v259
    %v261 = vshll.u32 920167782, %v246
    %v262 = vshrl.u32 1326507024, %v247
    %v263 = vor.u32 %v261, %v262
    %vm264 = vcmp.lt.s32.totalorder %v245, 1
    %vm265 = vcmp.lt.s32.totalorder %v245, 2
    %vm266 = vcmp.lt.s32.totalorder %v245, 3
    %vm267 = vcmp.lt.s32.totalorder %v245, 4
    %v268 = vsel %vm264, %v248, %v251
    %v269 = vsel %vm267, %v257, 2102212464
    %v270 = vsel %vm266, %v254, %v269
    %v271 = vsel %vm265, %v268, %v270
    %v272 = vsel %vm264, %v251, %v254
    %v273 = vsel %vm267, %v260, 920167782
    %v274 = vsel %vm266, %v257, %v273
    %v275 = vsel %vm265, %v272, %v274
    %v276 = vsel %vm264, %v254, %v257
    %v277 = vsel %vm267, %v263, 1326507024
    %v278 = vsel %vm266, %v260, %v277
    %v279 = vsel %vm265, %v276, %v278
    %v280 = vshll.u32 %v240, 8
    %v281 = vmul.u32.u64.compose %v280, %v279
    %v282 = vextract.low.u32 %v281
    %v283 = vextract.high.u32 %v281
    %v284 = vmul.u32.u64.compose %v280, %v275
    %v285 = vextract.low.u32 %v284
    %v286 = vextract.high.u32 %v284
    %v287 = vmul.u32 %v280, %v271
    %v288 = vadd.s32 %v283, %v285
    %vm289 = vc.u32 %v283, %v285
    %v290 = vadd.s32 %v286, 1
    %v291 = vsel %vm289, %v290, %v286
    %v292 = vadd.s32 %v287, %v291
    %v293 = vadd.s32 %v292, 536870912
    %v294 = vshrl.u32 %v293, 30
    %v295 = vshll.u32 %v294, 30
    %v296 = vsub.s32 %v292, %v295
    %vm297 = vcmp.lt.s32.totalorder %v296, 0
    %v298 = vsub.s32 0, %v296
    %v299 = vsel %vm297, %v298, %v296
    %v300 = vclz %v299
    %v301 = vsub.s32 %v300, 2
    %vm302 = vcmp.gt.s32.totalorder 0, %v301
    %v303 = vsel %vm302, 0, %v301
    %v304 = vsub.s32 32, %v303
    %v305 = vshll.u32 %v296, %v303
    %v306 = vshrl.u32 %v288, %v304
    %v307 = vor.u32 %v305, %v306
    %v308 = vsub.s32 4294967266, %v303
    %v309 = vadd.s32 %v308, 127
    %v310 = vshll.u32 %v309, 23
    %v311 = vor.u32 4788187, %v310
    %v312 = vand.u32 2147483647, %v311
    %v314 = vcvt.s32.f32 %v307
    %v315 = vmul.f32 %v314, %v312
    %v316 = vxor.u32 %v315, 2147483648
    %v317 = vsel %vm234, %v316, %v315
    %v318 = vsub.s32 4, %v294
    %v319 = vsel %vm234, %v318, %v294
    %v320 = vsel %vm233, %v121, %v317
    %v321 = vsel %vm233, 0, %v319
    %v322 = vcosq.f32.pop %v320
    %v323 = vsinq.f32.pop %v320
    %vm324 = vweird.f32 %v121
    %v325 = vadd.s32 %v321, 3
    %v326 = vand.u32 %v325, 3
    %vm327 = vcmp.lt.s32.totalorder %v326, 2
    %vm328 = vcmp.eq.s32.totalorder %v326, 0
    %v329 = vxor.u32 %v323, 2147483648
    %v330 = vsel %vm328, %v322, %v329
    %vm331 = vcmp.eq.s32.totalorder %v326, 2
    %v332 = vxor.u32 %v322, 2147483648
    %v333 = vsel %vm331, %v332, %v323
    %v334 = vsel %vm327, %v330, %v333
    %v335 = vsel %vm324, nan, %v334
    %v336 = vand.u32 2147483647, %v122
    %vm337 = vcmp.le.f32.partialorder %v336, 0.7853982
    %vm338 = vcmp.lt.s32.totalorder %v122, 0
    %v339 = vand.u32 %v122, 2139095040
    %v340 = vshrl.u32 %v339, 23
    %v341 = vsub.s32 %v340, 127
    %v342 = vand.u32 2147483647, %v122
    %v343 = vand.u32 %v342, 8388607
    %v344 = vor.u32 %v343, 8388608
    %v345 = vsub.s32 0, %v344
    %v346 = vadd.s32 %v341, 1
    %vm347 = vcmp.gt.s32.totalorder %v346, 0
    %v348 = vsel %vm347, %v346, 0
    %v349 = vshrl.u32 %v348, 5
    %v350 = vand.u32 %v348, 31
    %v351 = vsub.s32 32, %v350
    %v352 = vshrl.u32 683565275, %v351
    %v353 = vshll.u32 683565275, %v350
    %v354 = vshrl.u32 2475754826, %v351
    %v355 = vor.u32 %v353, %v354
    %v356 = vshll.u32 2475754826, %v350
    %v357 = vshrl.u32 2131351028, %v351
    %v358 = vor.u32 %v356, %v357
    %v359 = vshll.u32 2131351028, %v350
    %v360 = vshrl.u32 2102212464, %v351
    %v361 = vor.u32 %v359, %v360
    %v362 = vshll.u32 2102212464, %v350
    %v363 = vshrl.u32 920167782, %v351
    %v364 = vor.u32 %v362, %v363
    %v365 = vshll.u32 920167782, %v350
    %v366 = vshrl.u32 1326507024, %v351
    %v367 = vor.u32 %v365, %v366
    %vm368 = vcmp.lt.s32.totalorder %v349, 1
    %vm369 = vcmp.lt.s32.totalorder %v349, 2
    %vm370 = vcmp.lt.s32.totalorder %v349, 3
    %vm371 = vcmp.lt.s32.totalorder %v349, 4
    %v372 = vsel %vm368, %v352, %v355
    %v373 = vsel %vm371, %v361, 2102212464
    %v374 = vsel %vm370, %v358, %v373
    %v375 = vsel %vm369, %v372, %v374
    %v376 = vsel %vm368, %v355, %v358
    %v377 = vsel %vm371, %v364, 920167782
    %v378 = vsel %vm370, %v361, %v377
    %v379 = vsel %vm369, %v376, %v378
    %v380 = vsel %vm368, %v358, %v361
    %v381 = vsel %vm371, %v367, 1326507024
    %v382 = vsel %vm370, %v364, %v381
    %v383 = vsel %vm369, %v380, %v382
    %v384 = vshll.u32 %v344, 8
    %v385 = vmul.u32.u64.compose %v384, %v383
    %v386 = vextract.low.u32 %v385
    %v387 = vextract.high.u32 %v385
    %v388 = vmul.u32.u64.compose %v384, %v379
    %v389 = vextract.low.u32 %v388
    %v390 = vextract.high.u32 %v388
    %v391 = vmul.u32 %v384, %v375
    %v392 = vadd.s32 %v387, %v389
    %vm393 = vc.u32 %v387, %v389
    %v394 = vadd.s32 %v390, 1
    %v395 = vsel %vm393, %v394, %v390
    %v396 = vadd.s32 %v391, %v395
    %v397 = vadd.s32 %v396, 536870912
    %v398 = vshrl.u32 %v397, 30
    %v399 = vshll.u32 %v398, 30
    %v400 = vsub.s32 %v396, %v399
    %vm401 = vcmp.lt.s32.totalorder %v400, 0
    %v402 = vsub.s32 0, %v400
    %v403 = vsel %vm401, %v402, %v400
    %v404 = vclz %v403
    %v405 = vsub.s32 %v404, 2
    %vm406 = vcmp.gt.s32.totalorder 0, %v405
    %v407 = vsel %vm406, 0, %v405
    %v408 = vsub.s32 32, %v407
    %v409 = vshll.u32 %v400, %v407
    %v410 = vshrl.u32 %v392, %v408
    %v411 = vor.u32 %v409, %v410
    %v412 = vsub.s32 4294967266, %v407
    %v413 = vadd.s32 %v412, 127
    %v414 = vshll.u32 %v413, 23
    %v415 = vor.u32 4788187, %v414
    %v416 = vand.u32 2147483647, %v415
    %v418 = vcvt.s32.f32 %v411
    %v419 = vmul.f32 %v418, %v416
    %v420 = vxor.u32 %v419, 2147483648
    %v421 = vsel %vm338, %v420, %v419
    %v422 = vsub.s32 4, %v398
    %v423 = vsel %vm338, %v422, %v398
    %v424 = vsel %vm337, %v122, %v421
    %v425 = vsel %vm337, 0, %v423
    %v426 = vcosq.f32.pop %v424
    %v427 = vsinq.f32.pop %v424
    %vm428 = vweird.f32 %v122
    %v429 = vadd.s32 %v425, 3
    %v430 = vand.u32 %v429, 3
    %vm431 = vcmp.lt.s32.totalorder %v430, 2
    %vm432 = vcmp.eq.s32.totalorder %v430, 0
    %v433 = vxor.u32 %v427, 2147483648
    %v434 = vsel %vm432, %v426, %v433
    %vm435 = vcmp.eq.s32.totalorder %v430, 2
    %v436 = vxor.u32 %v426, 2147483648
    %v437 = vsel %vm435, %v436, %v427
    %v438 = vsel %vm431, %v434, %v437
    %v439 = vsel %vm428, nan, %v438
    %v440 = vand.u32 2147483647, %v123
    %vm441 = vcmp.le.f32.partialorder %v440, 0.7853982
    %vm442 = vcmp.lt.s32.totalorder %v123, 0
    %v443 = vand.u32 %v123, 2139095040
    %v444 = vshrl.u32 %v443, 23
    %v445 = vsub.s32 %v444, 127
    %v446 = vand.u32 2147483647, %v123
    %v447 = vand.u32 %v446, 8388607
    %v448 = vor.u32 %v447, 8388608
    %v449 = vsub.s32 0, %v448
    %v450 = vadd.s32 %v445, 1
    %vm451 = vcmp.gt.s32.totalorder %v450, 0
    %v452 = vsel %vm451, %v450, 0
    %v453 = vshrl.u32 %v452, 5
    %v454 = vand.u32 %v452, 31
    %v455 = vsub.s32 32, %v454
    %v456 = vshrl.u32 683565275, %v455
    %v457 = vshll.u32 683565275, %v454
    %v458 = vshrl.u32 2475754826, %v455
    %v459 = vor.u32 %v457, %v458
    %v460 = vshll.u32 2475754826, %v454
    %v461 = vshrl.u32 2131351028, %v455
    %v462 = vor.u32 %v460, %v461
    %v463 = vshll.u32 2131351028, %v454
    %v464 = vshrl.u32 2102212464, %v455
    %v465 = vor.u32 %v463, %v464
    %v466 = vshll.u32 2102212464, %v454
    %v467 = vshrl.u32 920167782, %v455
    %v468 = vor.u32 %v466, %v467
    %v469 = vshll.u32 920167782, %v454
    %v470 = vshrl.u32 1326507024, %v455
    %v471 = vor.u32 %v469, %v470
    %vm472 = vcmp.lt.s32.totalorder %v453, 1
    %vm473 = vcmp.lt.s32.totalorder %v453, 2
    %vm474 = vcmp.lt.s32.totalorder %v453, 3
    %vm475 = vcmp.lt.s32.totalorder %v453, 4
    %v476 = vsel %vm472, %v456, %v459
    %v477 = vsel %vm475, %v465, 2102212464
    %v478 = vsel %vm474, %v462, %v477
    %v479 = vsel %vm473, %v476, %v478
    %v480 = vsel %vm472, %v459, %v462
    %v481 = vsel %vm475, %v468, 920167782
    %v482 = vsel %vm474, %v465, %v481
    %v483 = vsel %vm473, %v480, %v482
    %v484 = vsel %vm472, %v462, %v465
    %v485 = vsel %vm475, %v471, 1326507024
    %v486 = vsel %vm474, %v468, %v485
    %v487 = vsel %vm473, %v484, %v486
    %v488 = vshll.u32 %v448, 8
    %v489 = vmul.u32.u64.compose %v488, %v487
    %v490 = vextract.low.u32 %v489
    %v491 = vextract.high.u32 %v489
    %v492 = vmul.u32.u64.compose %v488, %v483
    %v493 = vextract.low.u32 %v492
    %v494 = vextract.high.u32 %v492
    %v495 = vmul.u32 %v488, %v479
    %v496 = vadd.s32 %v491, %v493
    %vm497 = vc.u32 %v491, %v493
    %v498 = vadd.s32 %v494, 1
    %v499 = vsel %vm497, %v498, %v494
    %v500 = vadd.s32 %v495, %v499
    %v501 = vadd.s32 %v500, 536870912
    %v502 = vshrl.u32 %v501, 30
    %v503 = vshll.u32 %v502, 30
    %v504 = vsub.s32 %v500, %v503
    %vm505 = vcmp.lt.s32.totalorder %v504, 0
    %v506 = vsub.s32 0, %v504
    %v507 = vsel %vm505, %v506, %v504
    %v508 = vclz %v507
    %v509 = vsub.s32 %v508, 2
    %vm510 = vcmp.gt.s32.totalorder 0, %v509
    %v511 = vsel %vm510, 0, %v509
    %v512 = vsub.s32 32, %v511
    %v513 = vshll.u32 %v504, %v511
    %v514 = vshrl.u32 %v496, %v512
    %v515 = vor.u32 %v513, %v514
    %v516 = vsub.s32 4294967266, %v511
    %v517 = vadd.s32 %v516, 127
    %v518 = vshll.u32 %v517, 23
    %v519 = vor.u32 4788187, %v518
    %v520 = vand.u32 2147483647, %v519
    %v522 = vcvt.s32.f32 %v515
    %v523 = vmul.f32 %v522, %v520
    %v524 = vxor.u32 %v523, 2147483648
    %v525 = vsel %vm442, %v524, %v523
    %v526 = vsub.s32 4, %v502
    %v527 = vsel %vm442, %v526, %v502
    %v528 = vsel %vm441, %v123, %v525
    %v529 = vsel %vm441, 0, %v527
    %v530 = vcosq.f32.pop %v528
    %v531 = vsinq.f32.pop %v528
    %vm532 = vweird.f32 %v123
    %v533 = vadd.s32 %v529, 3
    %v534 = vand.u32 %v533, 3
    %vm535 = vcmp.lt.s32.totalorder %v534, 2
    %vm536 = vcmp.eq.s32.totalorder %v534, 0
    %v537 = vxor.u32 %v531, 2147483648
    %v538 = vsel %vm536, %v530, %v537
    %vm539 = vcmp.eq.s32.totalorder %v534, 2
    %v540 = vxor.u32 %v530, 2147483648
    %v541 = vsel %vm539, %v540, %v531
    %v542 = vsel %vm535, %v538, %v541
    %v543 = vsel %vm532, nan, %v542
    %v544 = vand.u32 2147483647, %v124
    %vm545 = vcmp.le.f32.partialorder %v544, 0.7853982
    %vm546 = vcmp.lt.s32.totalorder %v124, 0
    %v547 = vand.u32 %v124, 2139095040
    %v548 = vshrl.u32 %v547, 23
    %v549 = vsub.s32 %v548, 127
    %v550 = vand.u32 2147483647, %v124
    %v551 = vand.u32 %v550, 8388607
    %v552 = vor.u32 %v551, 8388608
    %v553 = vsub.s32 0, %v552
    %v554 = vadd.s32 %v549, 1
    %vm555 = vcmp.gt.s32.totalorder %v554, 0
    %v556 = vsel %vm555, %v554, 0
    %v557 = vshrl.u32 %v556, 5
    %v558 = vand.u32 %v556, 31
    %v559 = vsub.s32 32, %v558
    %v560 = vshrl.u32 683565275, %v559
    %v561 = vshll.u32 683565275, %v558
    %v562 = vshrl.u32 2475754826, %v559
    %v563 = vor.u32 %v561, %v562
    %v564 = vshll.u32 2475754826, %v558
    %v565 = vshrl.u32 2131351028, %v559
    %v566 = vor.u32 %v564, %v565
    %v567 = vshll.u32 2131351028, %v558
    %v568 = vshrl.u32 2102212464, %v559
    %v569 = vor.u32 %v567, %v568
    %v570 = vshll.u32 2102212464, %v558
    %v571 = vshrl.u32 920167782, %v559
    %v572 = vor.u32 %v570, %v571
    %v573 = vshll.u32 920167782, %v558
    %v574 = vshrl.u32 1326507024, %v559
    %v575 = vor.u32 %v573, %v574
    %vm576 = vcmp.lt.s32.totalorder %v557, 1
    %vm577 = vcmp.lt.s32.totalorder %v557, 2
    %vm578 = vcmp.lt.s32.totalorder %v557, 3
    %vm579 = vcmp.lt.s32.totalorder %v557, 4
    %v580 = vsel %vm576, %v560, %v563
    %v581 = vsel %vm579, %v569, 2102212464
    %v582 = vsel %vm578, %v566, %v581
    %v583 = vsel %vm577, %v580, %v582
    %v584 = vsel %vm576, %v563, %v566
    %v585 = vsel %vm579, %v572, 920167782
    %v586 = vsel %vm578, %v569, %v585
    %v587 = vsel %vm577, %v584, %v586
    %v588 = vsel %vm576, %v566, %v569
    %v589 = vsel %vm579, %v575, 1326507024
    %v590 = vsel %vm578, %v572, %v589
    %v591 = vsel %vm577, %v588, %v590
    %v592 = vshll.u32 %v552, 8
    %v593 = vmul.u32.u64.compose %v592, %v591
    %v594 = vextract.low.u32 %v593
    %v595 = vextract.high.u32 %v593
    %v596 = vmul.u32.u64.compose %v592, %v587
    %v597 = vextract.low.u32 %v596
    %v598 = vextract.high.u32 %v596
    %v599 = vmul.u32 %v592, %v583
    %v600 = vadd.s32 %v595, %v597
    %vm601 = vc.u32 %v595, %v597
    %v602 = vadd.s32 %v598, 1
    %v603 = vsel %vm601, %v602, %v598
    %v604 = vadd.s32 %v599, %v603
    %v605 = vadd.s32 %v604, 536870912
    %v606 = vshrl.u32 %v605, 30
    %v607 = vshll.u32 %v606, 30
    %v608 = vsub.s32 %v604, %v607
    %vm609 = vcmp.lt.s32.totalorder %v608, 0
    %v610 = vsub.s32 0, %v608
    %v611 = vsel %vm609, %v610, %v608
    %v612 = vclz %v611
    %v613 = vsub.s32 %v612, 2
    %vm614 = vcmp.gt.s32.totalorder 0, %v613
    %v615 = vsel %vm614, 0, %v613
    %v616 = vsub.s32 32, %v615
    %v617 = vshll.u32 %v608, %v615
    %v618 = vshrl.u32 %v600, %v616
    %v619 = vor.u32 %v617, %v618
    %v620 = vsub.s32 4294967266, %v615
    %v621 = vadd.s32 %v620, 127
    %v622 = vshll.u32 %v621, 23
    %v623 = vor.u32 4788187, %v622
    %v624 = vand.u32 2147483647, %v623
    %v626 = vcvt.s32.f32 %v619
    %v627 = vmul.f32 %v626, %v624
    %v628 = vxor.u32 %v627, 2147483648
    %v629 = vsel %vm546, %v628, %v627
    %v630 = vsub.s32 4, %v606
    %v631 = vsel %vm546, %v630, %v606
    %v632 = vsel %vm545, %v124, %v629
    %v633 = vsel %vm545, 0, %v631
    %v634 = vcosq.f32.pop %v632
    %v635 = vsinq.f32.pop %v632
    %vm636 = vweird.f32 %v124
    %v637 = vadd.s32 %v633, 3
    %v638 = vand.u32 %v637, 3
    %vm639 = vcmp.lt.s32.totalorder %v638, 2
    %vm640 = vcmp.eq.s32.totalorder %v638, 0
    %v641 = vxor.u32 %v635, 2147483648
    %v642 = vsel %vm640, %v634, %v641
    %vm643 = vcmp.eq.s32.totalorder %v638, 2
    %v644 = vxor.u32 %v634, 2147483648
    %v645 = vsel %vm643, %v644, %v635
    %v646 = vsel %vm639, %v642, %v645
    %v647 = vsel %vm636, nan, %v646
    %v648 = vand.u32 2147483647, %v125
    %vm649 = vcmp.le.f32.partialorder %v648, 0.7853982
    %vm650 = vcmp.lt.s32.totalorder %v125, 0
    %v651 = vand.u32 %v125, 2139095040
    %v652 = vshrl.u32 %v651, 23
    %v653 = vsub.s32 %v652, 127
    %v654 = vand.u32 2147483647, %v125
    %v655 = vand.u32 %v654, 8388607
    %v656 = vor.u32 %v655, 8388608
    %v657 = vsub.s32 0, %v656
    %v658 = vadd.s32 %v653, 1
    %vm659 = vcmp.gt.s32.totalorder %v658, 0
    %v660 = vsel %vm659, %v658, 0
    %v661 = vshrl.u32 %v660, 5
    %v662 = vand.u32 %v660, 31
    %v663 = vsub.s32 32, %v662
    %v664 = vshrl.u32 683565275, %v663
    %v665 = vshll.u32 683565275, %v662
    %v666 = vshrl.u32 2475754826, %v663
    %v667 = vor.u32 %v665, %v666
    %v668 = vshll.u32 2475754826, %v662
    %v669 = vshrl.u32 2131351028, %v663
    %v670 = vor.u32 %v668, %v669
    %v671 = vshll.u32 2131351028, %v662
    %v672 = vshrl.u32 2102212464, %v663
    %v673 = vor.u32 %v671, %v672
    %v674 = vshll.u32 2102212464, %v662
    %v675 = vshrl.u32 920167782, %v663
    %v676 = vor.u32 %v674, %v675
    %v677 = vshll.u32 920167782, %v662
    %v678 = vshrl.u32 1326507024, %v663
    %v679 = vor.u32 %v677, %v678
    %vm680 = vcmp.lt.s32.totalorder %v661, 1
    %vm681 = vcmp.lt.s32.totalorder %v661, 2
    %vm682 = vcmp.lt.s32.totalorder %v661, 3
    %vm683 = vcmp.lt.s32.totalorder %v661, 4
    %v684 = vsel %vm680, %v664, %v667
    %v685 = vsel %vm683, %v673, 2102212464
    %v686 = vsel %vm682, %v670, %v685
    %v687 = vsel %vm681, %v684, %v686
    %v688 = vsel %vm680, %v667, %v670
    %v689 = vsel %vm683, %v676, 920167782
    %v690 = vsel %vm682, %v673, %v689
    %v691 = vsel %vm681, %v688, %v690
    %v692 = vsel %vm680, %v670, %v673
    %v693 = vsel %vm683, %v679, 1326507024
    %v694 = vsel %vm682, %v676, %v693
    %v695 = vsel %vm681, %v692, %v694
    %v696 = vshll.u32 %v656, 8
    %v697 = vmul.u32.u64.compose %v696, %v695
    %v698 = vextract.low.u32 %v697
    %v699 = vextract.high.u32 %v697
    %v700 = vmul.u32.u64.compose %v696, %v691
    %v701 = vextract.low.u32 %v700
    %v702 = vextract.high.u32 %v700
    %v703 = vmul.u32 %v696, %v687
    %v704 = vadd.s32 %v699, %v701
    %vm705 = vc.u32 %v699, %v701
    %v706 = vadd.s32 %v702, 1
    %v707 = vsel %vm705, %v706, %v702
    %v708 = vadd.s32 %v703, %v707
    %v709 = vadd.s32 %v708, 536870912
    %v710 = vshrl.u32 %v709, 30
    %v711 = vshll.u32 %v710, 30
    %v712 = vsub.s32 %v708, %v711
    %vm713 = vcmp.lt.s32.totalorder %v712, 0
    %v714 = vsub.s32 0, %v712
    %v715 = vsel %vm713, %v714, %v712
    %v716 = vclz %v715
    %v717 = vsub.s32 %v716, 2
    %vm718 = vcmp.gt.s32.totalorder 0, %v717
    %v719 = vsel %vm718, 0, %v717
    %v720 = vsub.s32 32, %v719
    %v721 = vshll.u32 %v712, %v719
    %v722 = vshrl.u32 %v704, %v720
    %v723 = vor.u32 %v721, %v722
    %v724 = vsub.s32 4294967266, %v719
    %v725 = vadd.s32 %v724, 127
    %v726 = vshll.u32 %v725, 23
    %v727 = vor.u32 4788187, %v726
    %v728 = vand.u32 2147483647, %v727
    %v730 = vcvt.s32.f32 %v723
    %v731 = vmul.f32 %v730, %v728
    %v732 = vxor.u32 %v731, 2147483648
    %v733 = vsel %vm650, %v732, %v731
    %v734 = vsub.s32 4, %v710
    %v735 = vsel %vm650, %v734, %v710
    %v736 = vsel %vm649, %v125, %v733
    %v737 = vsel %vm649, 0, %v735
    %v738 = vcosq.f32.pop %v736
    %v739 = vsinq.f32.pop %v736
    %vm740 = vweird.f32 %v125
    %v741 = vadd.s32 %v737, 3
    %v742 = vand.u32 %v741, 3
    %vm743 = vcmp.lt.s32.totalorder %v742, 2
    %vm744 = vcmp.eq.s32.totalorder %v742, 0
    %v745 = vxor.u32 %v739, 2147483648
    %v746 = vsel %vm744, %v738, %v745
    %vm747 = vcmp.eq.s32.totalorder %v742, 2
    %v748 = vxor.u32 %v738, 2147483648
    %v749 = vsel %vm747, %v748, %v739
    %v750 = vsel %vm743, %v746, %v749
    %v751 = vsel %vm740, nan, %v750
    %v752 = vand.u32 2147483647, %v126
    %vm753 = vcmp.le.f32.partialorder %v752, 0.7853982
    %vm754 = vcmp.lt.s32.totalorder %v126, 0
    %v755 = vand.u32 %v126, 2139095040
    %v756 = vshrl.u32 %v755, 23
    %v757 = vsub.s32 %v756, 127
    %v758 = vand.u32 2147483647, %v126
    %v759 = vand.u32 %v758, 8388607
    %v760 = vor.u32 %v759, 8388608
    %v761 = vsub.s32 0, %v760
    %v762 = vadd.s32 %v757, 1
    %vm763 = vcmp.gt.s32.totalorder %v762, 0
    %v764 = vsel %vm763, %v762, 0
    %v765 = vshrl.u32 %v764, 5
    %v766 = vand.u32 %v764, 31
    %v767 = vsub.s32 32, %v766
    %v768 = vshrl.u32 683565275, %v767
    %v769 = vshll.u32 683565275, %v766
    %v770 = vshrl.u32 2475754826, %v767
    %v771 = vor.u32 %v769, %v770
    %v772 = vshll.u32 2475754826, %v766
    %v773 = vshrl.u32 2131351028, %v767
    %v774 = vor.u32 %v772, %v773
    %v775 = vshll.u32 2131351028, %v766
    %v776 = vshrl.u32 2102212464, %v767
    %v777 = vor.u32 %v775, %v776
    %v778 = vshll.u32 2102212464, %v766
    %v779 = vshrl.u32 920167782, %v767
    %v780 = vor.u32 %v778, %v779
    %v781 = vshll.u32 920167782, %v766
    %v782 = vshrl.u32 1326507024, %v767
    %v783 = vor.u32 %v781, %v782
    %vm784 = vcmp.lt.s32.totalorder %v765, 1
    %vm785 = vcmp.lt.s32.totalorder %v765, 2
    %vm786 = vcmp.lt.s32.totalorder %v765, 3
    %vm787 = vcmp.lt.s32.totalorder %v765, 4
    %v788 = vsel %vm784, %v768, %v771
    %v789 = vsel %vm787, %v777, 2102212464
    %v790 = vsel %vm786, %v774, %v789
    %v791 = vsel %vm785, %v788, %v790
    %v792 = vsel %vm784, %v771, %v774
    %v793 = vsel %vm787, %v780, 920167782
    %v794 = vsel %vm786, %v777, %v793
    %v795 = vsel %vm785, %v792, %v794
    %v796 = vsel %vm784, %v774, %v777
    %v797 = vsel %vm787, %v783, 1326507024
    %v798 = vsel %vm786, %v780, %v797
    %v799 = vsel %vm785, %v796, %v798
    %v800 = vshll.u32 %v760, 8
    %v801 = vmul.u32.u64.compose %v800, %v799
    %v802 = vextract.low.u32 %v801
    %v803 = vextract.high.u32 %v801
    %v804 = vmul.u32.u64.compose %v800, %v795
    %v805 = vextract.low.u32 %v804
    %v806 = vextract.high.u32 %v804
    %v807 = vmul.u32 %v800, %v791
    %v808 = vadd.s32 %v803, %v805
    %vm809 = vc.u32 %v803, %v805
    %v810 = vadd.s32 %v806, 1
    %v811 = vsel %vm809, %v810, %v806
    %v812 = vadd.s32 %v807, %v811
    %v813 = vadd.s32 %v812, 536870912
    %v814 = vshrl.u32 %v813, 30
    %v815 = vshll.u32 %v814, 30
    %v816 = vsub.s32 %v812, %v815
    %vm817 = vcmp.lt.s32.totalorder %v816, 0
    %v818 = vsub.s32 0, %v816
    %v819 = vsel %vm817, %v818, %v816
    %v820 = vclz %v819
    %v821 = vsub.s32 %v820, 2
    %vm822 = vcmp.gt.s32.totalorder 0, %v821
    %v823 = vsel %vm822, 0, %v821
    %v824 = vsub.s32 32, %v823
    %v825 = vshll.u32 %v816, %v823
    %v826 = vshrl.u32 %v808, %v824
    %v827 = vor.u32 %v825, %v826
    %v828 = vsub.s32 4294967266, %v823
    %v829 = vadd.s32 %v828, 127
    %v830 = vshll.u32 %v829, 23
    %v831 = vor.u32 4788187, %v830
    %v832 = vand.u32 2147483647, %v831
    %v834 = vcvt.s32.f32 %v827
    %v835 = vmul.f32 %v834, %v832
    %v836 = vxor.u32 %v835, 2147483648
    %v837 = vsel %vm754, %v836, %v835
    %v838 = vsub.s32 4, %v814
    %v839 = vsel %vm754, %v838, %v814
    %v840 = vsel %vm753, %v126, %v837
    %v841 = vsel %vm753, 0, %v839
    %v842 = vcosq.f32.pop %v840
    %v843 = vsinq.f32.pop %v840
    %vm844 = vweird.f32 %v126
    %v845 = vadd.s32 %v841, 3
    %v846 = vand.u32 %v845, 3
    %vm847 = vcmp.lt.s32.totalorder %v846, 2
    %vm848 = vcmp.eq.s32.totalorder %v846, 0
    %v849 = vxor.u32 %v843, 2147483648
    %v850 = vsel %vm848, %v842, %v849
    %vm851 = vcmp.eq.s32.totalorder %v846, 2
    %v852 = vxor.u32 %v842, 2147483648
    %v853 = vsel %vm851, %v852, %v843
    %v854 = vsel %vm847, %v850, %v853
    %v855 = vsel %vm844, nan, %v854
    %v856 = vand.u32 2147483647, %v127
    %vm857 = vcmp.le.f32.partialorder %v856, 0.7853982
    %vm858 = vcmp.lt.s32.totalorder %v127, 0
    %v859 = vand.u32 %v127, 2139095040
    %v860 = vshrl.u32 %v859, 23
    %v861 = vsub.s32 %v860, 127
    %v862 = vand.u32 2147483647, %v127
    %v863 = vand.u32 %v862, 8388607
    %v864 = vor.u32 %v863, 8388608
    %v865 = vsub.s32 0, %v864
    %v866 = vadd.s32 %v861, 1
    %vm867 = vcmp.gt.s32.totalorder %v866, 0
    %v868 = vsel %vm867, %v866, 0
    %v869 = vshrl.u32 %v868, 5
    %v870 = vand.u32 %v868, 31
    %v871 = vsub.s32 32, %v870
    %v872 = vshrl.u32 683565275, %v871
    %v873 = vshll.u32 683565275, %v870
    %v874 = vshrl.u32 2475754826, %v871
    %v875 = vor.u32 %v873, %v874
    %v876 = vshll.u32 2475754826, %v870
    %v877 = vshrl.u32 2131351028, %v871
    %v878 = vor.u32 %v876, %v877
    %v879 = vshll.u32 2131351028, %v870
    %v880 = vshrl.u32 2102212464, %v871
    %v881 = vor.u32 %v879, %v880
    %v882 = vshll.u32 2102212464, %v870
    %v883 = vshrl.u32 920167782, %v871
    %v884 = vor.u32 %v882, %v883
    %v885 = vshll.u32 920167782, %v870
    %v886 = vshrl.u32 1326507024, %v871
    %v887 = vor.u32 %v885, %v886
    %vm888 = vcmp.lt.s32.totalorder %v869, 1
    %vm889 = vcmp.lt.s32.totalorder %v869, 2
    %vm890 = vcmp.lt.s32.totalorder %v869, 3
    %vm891 = vcmp.lt.s32.totalorder %v869, 4
    %v892 = vsel %vm888, %v872, %v875
    %v893 = vsel %vm891, %v881, 2102212464
    %v894 = vsel %vm890, %v878, %v893
    %v895 = vsel %vm889, %v892, %v894
    %v896 = vsel %vm888, %v875, %v878
    %v897 = vsel %vm891, %v884, 920167782
    %v898 = vsel %vm890, %v881, %v897
    %v899 = vsel %vm889, %v896, %v898
    %v900 = vsel %vm888, %v878, %v881
    %v901 = vsel %vm891, %v887, 1326507024
    %v902 = vsel %vm890, %v884, %v901
    %v903 = vsel %vm889, %v900, %v902
    %v904 = vshll.u32 %v864, 8
    %v905 = vmul.u32.u64.compose %v904, %v903
    %v906 = vextract.low.u32 %v905
    %v907 = vextract.high.u32 %v905
    %v908 = vmul.u32.u64.compose %v904, %v899
    %v909 = vextract.low.u32 %v908
    %v910 = vextract.high.u32 %v908
    %v911 = vmul.u32 %v904, %v895
    %v912 = vadd.s32 %v907, %v909
    %vm913 = vc.u32 %v907, %v909
    %v914 = vadd.s32 %v910, 1
    %v915 = vsel %vm913, %v914, %v910
    %v916 = vadd.s32 %v911, %v915
    %v917 = vadd.s32 %v916, 536870912
    %v918 = vshrl.u32 %v917, 30
    %v919 = vshll.u32 %v918, 30
    %v920 = vsub.s32 %v916, %v919
    %vm921 = vcmp.lt.s32.totalorder %v920, 0
    %v922 = vsub.s32 0, %v920
    %v923 = vsel %vm921, %v922, %v920
    %v924 = vclz %v923
    %v925 = vsub.s32 %v924, 2
    %vm926 = vcmp.gt.s32.totalorder 0, %v925
    %v927 = vsel %vm926, 0, %v925
    %v928 = vsub.s32 32, %v927
    %v929 = vshll.u32 %v920, %v927
    %v930 = vshrl.u32 %v912, %v928
    %v931 = vor.u32 %v929, %v930
    %v932 = vsub.s32 4294967266, %v927
    %v933 = vadd.s32 %v932, 127
    %v934 = vshll.u32 %v933, 23
    %v935 = vor.u32 4788187, %v934
    %v936 = vand.u32 2147483647, %v935
    %v938 = vcvt.s32.f32 %v931
    %v939 = vmul.f32 %v938, %v936
    %v940 = vxor.u32 %v939, 2147483648
    %v941 = vsel %vm858, %v940, %v939
    %v942 = vsub.s32 4, %v918
    %v943 = vsel %vm858, %v942, %v918
    %v944 = vsel %vm857, %v127, %v941
    %v945 = vsel %vm857, 0, %v943
    %v946 = vcosq.f32.pop %v944
    %v947 = vsinq.f32.pop %v944
    %vm948 = vweird.f32 %v127
    %v949 = vadd.s32 %v945, 3
    %v950 = vand.u32 %v949, 3
    %vm951 = vcmp.lt.s32.totalorder %v950, 2
    %vm952 = vcmp.eq.s32.totalorder %v950, 0
    %v953 = vxor.u32 %v947, 2147483648
    %v954 = vsel %vm952, %v946, %v953
    %vm955 = vcmp.eq.s32.totalorder %v950, 2
    %v956 = vxor.u32 %v946, 2147483648
    %v957 = vsel %vm955, %v956, %v947
    %v958 = vsel %vm951, %v954, %v957
    %v959 = vsel %vm948, nan, %v958
    %v968 = vrot.slane %v231, 4
    %v969 = vrot.slane %v335, 4
    %v970 = vsel %vm38, %v968, %v969
    %v971 = vrot.slane %v439, 4
    %v972 = vsel %vm38, %v969, %v971
    %v973 = vrot.slane %v543, 4
    %v974 = vsel %vm38, %v971, %v973
    %v975 = vrot.slane %v647, 4
    %v976 = vsel %vm38, %v973, %v975
    %v977 = vrot.slane %v751, 4
    %v978 = vsel %vm38, %v975, %v977
    %v979 = vrot.slane %v855, 4
    %v980 = vsel %vm38, %v977, %v979
    %v981 = vrot.slane %v959, 4
    %v982 = vsel %vm38, %v979, %v981
    %v992 = vsel %vm38, %v26, %v968
    %v993 = vsel %vm38, %v981, 0.0
    %994 = vxpose.xlu0.b32.start [1/16] %v992, 128
    %995 = vxpose.xlu0.b32.cont [2/16] %v970, 128
    %996 = vxpose.xlu0.b32.cont [3/16] %v972, 128
    %997 = vxpose.xlu0.b32.cont [4/16] %v974, 128
    %998 = vxpose.xlu0.b32.cont [5/16] %v976, 128
    %999 = vxpose.xlu0.b32.cont [6/16] %v978, 128
    %1000 = vxpose.xlu0.b32.cont [7/16] %v980, 128
    %1001 = vxpose.xlu0.b32.cont [8/16] %v982, 128
    %1002 = vxpose.xlu0.b32.cont [9/16] %v993, 128
    %1003 = vxpose.xlu0.b32.cont [10/16] 0.0, 128
    %1004 = vxpose.xlu0.b32.cont [11/16] 0.0, 128
    %1005 = vxpose.xlu0.b32.cont [12/16] 0.0, 128
    %1006 = vxpose.xlu0.b32.cont [13/16] 0.0, 128
    %1007 = vxpose.xlu0.b32.cont [14/16] 0.0, 128
    %1008 = vxpose.xlu0.b32.cont [15/16] 0.0, 128
    %1009 = vxpose.xlu0.b32.end [16/16] 0.0, 128
    %v1010 = vpop.trf.xlu0
    %v1011 = vpop.trf.xlu0
    %v1012 = vpop.trf.xlu0
    %v1013 = vpop.trf.xlu0
    %v1014 = vpop.trf.xlu0
    %v1015 = vpop.trf.xlu0
    %v1016 = vpop.trf.xlu0
    %v1017 = vpop.trf.xlu0
    %v1018 = vpop.trf.xlu0
    %v1019 = vpop.trf.xlu0
    %v1020 = vpop.trf.xlu0
    %v1021 = vpop.trf.xlu0
    %v1022 = vpop.trf.xlu0
    %v1023 = vpop.trf.xlu0
    %v1024 = vpop.trf.xlu0
    %v1025 = vpop.trf.xlu0
    %vm1026 = vcmask 556032
    %1027 = vst.msk [vmem:[#allocation5] sm:$0xff] %vm1026, %v1010
    %1028 = vst.msk [vmem:[#allocation5 + $0x8] sm:$0xff] %vm1026, %v1011
    %1029 = vst.msk [vmem:[#allocation5 + $0x10] sm:$0xff] %vm1026, %v1012
    %1030 = vst.msk [vmem:[#allocation5 + $0x18] sm:$0xff] %vm1026, %v1013
    %1031 = vst.msk [vmem:[#allocation5 + $0x20] sm:$0xff] %vm1026, %v1014
    %1032 = vst.msk [vmem:[#allocation5 + $0x28] sm:$0xff] %vm1026, %v1015
    %1033 = vst.msk [vmem:[#allocation5 + $0x30] sm:$0xff] %vm1026, %v1016
    %1034 = vst.msk [vmem:[#allocation5 + $0x38] sm:$0xff] %vm1026, %v1017
    %1035 = vst.msk [vmem:[#allocation5 + $0x40] sm:$0xff] %vm1026, %v1018
    %1036 = vst.msk [vmem:[#allocation5 + $0x48] sm:$0xff] %vm1026, %v1019
    %1037 = vst.msk [vmem:[#allocation5 + $0x50] sm:$0xff] %vm1026, %v1020
    %1038 = vst.msk [vmem:[#allocation5 + $0x58] sm:$0xff] %vm1026, %v1021
    %1039 = vst.msk [vmem:[#allocation5 + $0x60] sm:$0xff] %vm1026, %v1022
    %1040 = vst.msk [vmem:[#allocation5 + $0x68] sm:$0xff] %vm1026, %v1023
    %1041 = vst.msk [vmem:[#allocation5 + $0x70] sm:$0xff] %vm1026, %v1024
    %1042 = vst.msk [vmem:[#allocation5 + $0x78] sm:$0xff] %vm1026, %v1025
    // Predicated region
    $region14: #{apply.1} parent=1 // pred_check
      _
    $region15: #{apply.1} parent=1 // pred_check_branch
      %1044 = sbr.rel (0) target = $region17
    $region16: #{apply.1} parent=1 // pred_region
      %s1046 = ssub.s32 2048, 256
      %1047 = vsyncadd [#allocation4], %s1046
      %s1048 = sshll.u32 [#allocation5], 4
      %s1049 = int_to_ptr.vmem [resolvable:$true] %s1048
      %1054 = dma.vmem_to_hbm [thread:$0]  %s1049, 256, %s2, [#allocation4], 128, 128, 8
    $region17: #{apply.1} parent=1 // pred_fallthru
      _
    // Predicated region
    $region18: #{apply.1} parent=1 // pred_check
      _
    $region19: #{apply.1} parent=1 // pred_check_branch
      %1056 = sbr.rel (0) target = $region21
    $region20: #{apply.1} parent=1 // pred_region
      %1057 = dma.done [#allocation4], 2048
    $region21: #{apply.1} parent=1 // pred_fallthru
      _
    %1058 = vsyncpa [#allocation3], 1
    %1059 = vsyncpa [#allocation4], 1

</llo_original>
